<compile_context>
chip_gen: v6e
topology: v6e:2x2x1
jax: 0.10.0
libtpu: 0.0.40
codegen_flags: <defaults>
</compile_context>

<pallas_src>
import functools
import math

import jax
import jax.numpy as jnp
from jax.experimental import pallas as pl
from jax.experimental.pallas import tpu as pltpu

# TODO(synk): EPS is a module-level global in GTSA.py that is not shown in the
# snippet; we assume the common value 1e-8.
EPS = 1e-8
VAR_EPS = 1e-10

# MXU input dtype. jnp.float32 keeps tight parity with the f32 reference; set to
# jnp.bfloat16 on v6e/v7x for ~4x MXU throughput (accumulation stays f32 via
# preferred_element_type; tolerances loosen slightly).
_MXU_DTYPE = jnp.float32


def _mxu(x):
    return x.astype(_MXU_DTYPE)


# --------------------------------------------------------------------------
# VMEM budgeting / compiler params
# --------------------------------------------------------------------------
@functools.lru_cache(maxsize=None)
def _vmem_limit_bytes():
    """Scoped-VMEM limit: 3/4 of per-core capacity, v7x-safe 48 MiB fallback."""
    cap = 64 << 20  # v7x per-TensorCore VMEM (smallest across v5e/v6e/v7x)
    try:
        q = int(getattr(pltpu.get_tpu_info(), "vmem_capacity_bytes", 0))
        if q > 0:
            cap = max(32 << 20, min(q, 128 << 20))
    except Exception:
        pass
    return (cap * 3) // 4


def _pick_block_batch(batch, per_batch_bytes, fixed_bytes):
    """Largest divisor of `batch` whose estimated VMEM footprint fits the budget.

    Capped at batch // 2 so the 'parallel' grid has >= 2 steps and both v7x
    TensorCores get work (single-TC v5e/v6e lose nothing).  Falls back to 1 even
    if a single batch overshoots the budget (the generous vmem_limit_bytes then
    just costs pipelining depth rather than failing).
    """
    budget = (_vmem_limit_bytes() * 4) // 5
    max_block = max(1, batch // 2)
    best = 1
    for cand in range(1, batch + 1):
        if batch % cand or cand > max_block:
            continue
        if fixed_bytes + cand * per_batch_bytes <= budget:
            best = cand
    return best


def _compiler_params():
    return pltpu.CompilerParams(
        dimension_semantics=("parallel",),
        vmem_limit_bytes=_vmem_limit_bytes())


# --------------------------------------------------------------------------
# Kernel A: in-kernel transpose + stacked QKV + cache roll + attention
# --------------------------------------------------------------------------
def _qkv_attn_kernel(x_ref, kold_ref, vold_ref, wqkv_ref, bqkv_ref, g_ref,
                     o_ref, kf_ref, vf_ref, *, num_heads):
    bb, c, t = x_ref.shape
    l = kold_ref.shape[1]
    dh = c // num_heads
    lo = l - t

    # (bb, C, T) -> (bb, T, C): XLU transpose inside the kernel instead of a
    # wrapper-level HBM round trip.
    xt = jnp.transpose(x_ref[...].astype(jnp.float32), (0, 2, 1))

    # Stacked QKV projection: one MXU matmul with N = 3C (lane-dense result).
    qkv = jnp.dot(_mxu(xt.reshape(bb * t, c)), _mxu(wqkv_ref[...]),
                  preferred_element_type=jnp.float32) + bqkv_ref[...]
    q = qkv[:, :c].reshape(bb, t, c)
    kn = qkv[:, c:2 * c].reshape(bb, t, c)
    vn = qkv[:, 2 * c:].reshape(bb, t, c)

    # Streaming K/V cache roll written straight into the new-cache outputs
    # (old tail + freshly projected rows); reused below for the attention.
    if lo > 0:
        kf_ref[:, :lo, :] = kold_ref[:, t:, :].astype(kf_ref.dtype)
        vf_ref[:, :lo, :] = vold_ref[:, t:, :].astype(vf_ref.dtype)
    kf_ref[:, lo:, :] = kn.astype(kf_ref.dtype)
    vf_ref[:, lo:, :] = vn.astype(vf_ref.dtype)
    kf = kf_ref[...].astype(jnp.float32)
    vf = vf_ref[...].astype(jnp.float32)

    g = g_ref[...]                          # (T, L), 1/sqrt(model_dim) folded in
    o_parts = []
    for h in range(num_heads):              # static unroll over heads
        sl = slice(h * dh, (h + 1) * dh)
        s = jnp.einsum('btd,bld->btl', _mxu(q[:, :, sl]), _mxu(kf[:, :, sl]),
                       preferred_element_type=jnp.float32)
        s = jnp.abs(s * g)
        m = jnp.max(s, axis=-1, keepdims=True)
        p = jnp.exp(s - m)
        denom = jnp.sum(p, axis=-1, keepdims=True)
        oh = jnp.einsum('btl,bld->btd', _mxu(p), _mxu(vf[:, :, sl]),
                        preferred_element_type=jnp.float32)
        # Deferred softmax normalization: one EUP reciprocal + T*dh multiplies
        # instead of T*L divides.
        o_parts.append(oh * pl.reciprocal(denom, approx=True))

    # Heads packed back on the channel axis -> one lane-dense (bb, T, C) store.
    o_ref[...] = jnp.concatenate(o_parts, axis=-1).astype(o_ref.dtype)


# --------------------------------------------------------------------------
# Kernel B: output proj + residual + GLN + FFN + residual + GLN (fused)
# --------------------------------------------------------------------------
def _gln_last(h, w, b, eps):
    """GlobalLayerNorm(last=True, time=False) on h (bb, T, C); w/b are (1,1,C).

    Two-pass mean / (x-mean)^2 variance (same formulation as the PyTorch module,
    numerically stable); scale/shift folded so one multiply-add touches h.
    """
    n = 1.0 / float(h.shape[1] * h.shape[2])
    mean = jnp.sum(h, axis=(1, 2), keepdims=True) * n
    cen = h - mean
    var = jnp.sum(cen * cen, axis=(1, 2), keepdims=True) * n
    inv = 1.0 / (jnp.sqrt(var + VAR_EPS) + eps)   # exact PyTorch denominator
    return cen * (w * inv) + b


def _proj_ffn_norm_kernel(a_ref, x_ref, wo_ref, bo_ref, naw_ref, nab_ref,
                          wi_ref, bi_ref, wo2_ref, bo2_ref, niw_ref, nib_ref,
                          y_ref, *, eps):
    bb, t, c = a_ref.shape
    a2 = a_ref[...].astype(jnp.float32).reshape(bb * t, c)
    # Residual path: x is read as (bb, C, T) and transposed in-kernel.
    xt = jnp.transpose(x_ref[...].astype(jnp.float32), (0, 2, 1))

    # Attention output projection + residual + GLN.
    h = jnp.dot(_mxu(a2), _mxu(wo_ref[...]),
                preferred_element_type=jnp.float32) + bo_ref[...]
    h = _gln_last(h.reshape(bb, t, c) + xt, naw_ref[...], nab_ref[...], eps)

    # Feed-forward (ReLU) + residual + GLN, fused in the same block.
    # TODO(synk): nn.Dropout(p=0.0) is the identity; not implemented.
    u = jnp.maximum(
        jnp.dot(_mxu(h.reshape(bb * t, c)), _mxu(wi_ref[...]),
                preferred_element_type=jnp.float32) + bi_ref[...], 0.0)
    z = jnp.dot(_mxu(u), _mxu(wo2_ref[...]),
                preferred_element_type=jnp.float32) + bo2_ref[...]
    y = _gln_last(z.reshape(bb, t, c) + h, niw_ref[...], nib_ref[...], eps)

    # Fold the final (B, T, C) -> (B, C, T) transpose into the store.
    # NOTE: for very small T the output store is not lane-dense; if this store
    # shows up hot with tiny T, keep C on lanes and transpose outside instead.
    y_ref[...] = jnp.transpose(y, (0, 2, 1)).astype(y_ref.dtype)


# --------------------------------------------------------------------------
# pallas_call wrappers
# --------------------------------------------------------------------------
def _qkv_attention(x, bk, bv, wqkv, bqkv, g, num_heads):
    B, C, T = x.shape
    L = bk.shape[1]
    f32 = 4
    # 2x on pipelined in/out blocks (double buffering) + f32 temporaries.
    per_batch = f32 * (2 * (2 * T * C + 4 * L * C)
                       + 8 * T * C + 2 * L * C + 4 * num_heads * T * L)
    fixed = 2 * f32 * (3 * C * C + 3 * C + T * L)
    bb = _pick_block_batch(B, per_batch, fixed)
    kernel = functools.partial(_qkv_attn_kernel, num_heads=num_heads)
    return pl.pallas_call(
        kernel,
        grid=(B // bb,),
        in_specs=[
            pl.BlockSpec((bb, C, T), lambda i: (i, 0, 0)),
            pl.BlockSpec((bb, L, C), lambda i: (i, 0, 0)),
            pl.BlockSpec((bb, L, C), lambda i: (i, 0, 0)),
            pl.BlockSpec((C, 3 * C), lambda i: (0, 0)),
            pl.BlockSpec((1, 3 * C), lambda i: (0, 0)),
            pl.BlockSpec((T, L), lambda i: (0, 0)),
        ],
        out_specs=[
            pl.BlockSpec((bb, T, C), lambda i: (i, 0, 0)),
            pl.BlockSpec((bb, L, C), lambda i: (i, 0, 0)),
            pl.BlockSpec((bb, L, C), lambda i: (i, 0, 0)),
        ],
        out_shape=[
            jax.ShapeDtypeStruct((B, T, C), x.dtype),
            jax.ShapeDtypeStruct((B, L, C), bk.dtype),
            jax.ShapeDtypeStruct((B, L, C), bv.dtype),
        ],
        compiler_params=_compiler_params(),
    )(x, bk, bv, wqkv, bqkv, g)


def _proj_ffn_norm(attn, x, params):
    B, C, T = x.shape
    FN = params["wi"].shape[1]
    f32 = 4
    per_batch = f32 * (2 * 3 * T * C + 4 * T * C + 2 * T * FN)
    fixed = 2 * f32 * (C * C + 2 * C * FN + FN + 6 * C)
    bb = _pick_block_batch(B, per_batch, fixed)
    kernel = functools.partial(_proj_ffn_norm_kernel, eps=EPS)
    return pl.pallas_call(
        kernel,
        grid=(B // bb,),
        in_specs=[
            pl.BlockSpec((bb, T, C), lambda i: (i, 0, 0)),
            pl.BlockSpec((bb, C, T), lambda i: (i, 0, 0)),
            pl.BlockSpec((C, C), lambda i: (0, 0)),
            pl.BlockSpec((1, C), lambda i: (0, 0)),
            pl.BlockSpec((1, 1, C), lambda i: (0, 0, 0)),
            pl.BlockSpec((1, 1, C), lambda i: (0, 0, 0)),
            pl.BlockSpec((C, FN), lambda i: (0, 0)),
            pl.BlockSpec((1, FN), lambda i: (0, 0)),
            pl.BlockSpec((FN, C), lambda i: (0, 0)),
            pl.BlockSpec((1, C), lambda i: (0, 0)),
            pl.BlockSpec((1, 1, C), lambda i: (0, 0, 0)),
            pl.BlockSpec((1, 1, C), lambda i: (0, 0, 0)),
        ],
        out_specs=pl.BlockSpec((bb, C, T), lambda i: (i, 0, 0)),
        out_shape=jax.ShapeDtypeStruct((B, C, T), x.dtype),
        compiler_params=_compiler_params(),
    )(attn, x, params["wo"], params["bo"].reshape(1, C),
      params["na_w"], params["na_b"],
      params["wi"], params["bi"].reshape(1, FN),
      params["wo2"], params["bo2"].reshape(1, C),
      params["ni_w"], params["ni_b"])


# --------------------------------------------------------------------------
# Full TransformerLayer forward (functional: returns the new K/V cache)
# --------------------------------------------------------------------------
def transformer_layer_forward(x, params, bk_state, bv_state):
    """x: (B, model_dim, T). Cache bk/bv: (B, maxlen, model_dim), heads on C.

    Returns (y (B, model_dim, T), new_bk, new_bv).
    """
    B, C, T = x.shape
    H = params["num_heads"]
    L = params["maxlen"]

    # Parameter-derived glue (constant-folded under jit): stacked QKV weights
    # and the Gaussian locality table with the 1/sqrt(model_dim) scale folded in.
    wqkv = jnp.concatenate([params["wq"], params["wk"], params["wv"]], axis=1)
    bqkv = jnp.concatenate([params["bq"], params["bk"], params["bv"]],
                           axis=0).reshape(1, 3 * C)
    r = jnp.arange(1, L + 1, dtype=jnp.float32)
    ind = -(r[:, None] - r[None, :]) ** 2
    g = (jnp.exp(ind / (params["delta"] ** 2 + EPS))[-T:, :]
         / math.sqrt(C)).astype(jnp.float32)

    o, kf, vf = _qkv_attention(x, bk_state, bv_state, wqkv, bqkv, g, H)
    y = _proj_ffn_norm(o, x, params)
    return y, kf, vf


# --------------------------------------------------------------------------
# Pure-JAX reference mirroring the PyTorch forward (module cache layout)
# --------------------------------------------------------------------------
def _ref_gln_last(x, w, b):
    mean = jnp.mean(x, axis=(1, 2), keepdims=True)
    var = jnp.mean((x - mean) ** 2, axis=(1, 2), keepdims=True)
    return (x - mean) / (jnp.sqrt(var + VAR_EPS) + EPS) * w + b


def _ref_forward(x, params, bk_state, bv_state):
    B, C, T = x.shape
    H = params["num_heads"]
    L = params["maxlen"]
    hp = "highest"
    xt = jnp.transpose(x, (0, 2, 1))
    q = jnp.matmul(xt, params["wq"], precision=hp) + params["bq"]
    k = jnp.matmul(xt, params["wk"], precision=hp) + params["bk"]
    v = jnp.matmul(xt, params["wv"], precision=hp) + params["bv"]

    def to_heads(z):
        return jnp.concatenate(jnp.split(z, H, axis=-1), axis=0)

    qh, kh, vh = to_heads(q), to_heads(k), to_heads(v)
    kf = jnp.concatenate([bk_state[:, T:], kh], axis=1)
    vf = jnp.concatenate([bv_state[:, T:], vh], axis=1)

    r = jnp.arange(1, L + 1, dtype=jnp.float32)
    ind = -(r[:, None] - r[None, :]) ** 2
    G = jnp.exp(ind / (params["delta"] ** 2 + EPS))[None]
    d = jnp.sqrt(jnp.float32(C))

    s = jnp.abs(jnp.einsum("btd,bld->btl", qh, kf, precision=hp)
                * G[:, -T:] / d)
    p = jax.nn.softmax(s, axis=-1)
    o = jnp.einsum("btl,bld->btd", p, vf, precision=hp)
    om = jnp.concatenate(jnp.split(o, H, axis=0), axis=-1)

    a = jnp.matmul(om, params["wo"], precision=hp) + params["bo"] + xt
    a = _ref_gln_last(a, params["na_w"], params["na_b"])
    u = jax.nn.relu(jnp.matmul(a, params["wi"], precision=hp) + params["bi"])
    z = jnp.matmul(u, params["wo2"], precision=hp) + params["bo2"] + a
    y = _ref_gln_last(z, params["ni_w"], params["ni_b"])
    return jnp.transpose(y, (0, 2, 1)), kf, vf


# --------------------------------------------------------------------------
# Deterministic parameter init (torch-Linear-like scales)
# --------------------------------------------------------------------------
def init_params(key, num_heads, model_dim, fn_dim, maxlen):
    ks = jax.random.split(key, 16)

    def lin(k, fan_in, fan_out):
        kw, kb = jax.random.split(k)
        bound = 1.0 / math.sqrt(fan_in)
        w = jax.random.uniform(kw, (fan_in, fan_out), jnp.float32, -bound, bound)
        b = jax.random.uniform(kb, (fan_out,), jnp.float32, -bound, bound)
        return w, b

    wq, bq = lin(ks[0], model_dim, model_dim)
    wk, bk = lin(ks[1], model_dim, model_dim)
    wv, bv = lin(ks[2], model_dim, model_dim)
    wo, bo = lin(ks[3], model_dim, model_dim)
    wi, bi = lin(ks[4], model_dim, fn_dim)
    wo2, bo2 = lin(ks[5], fn_dim, model_dim)
    na_w = 1.0 + 0.1 * jax.random.normal(ks[6], (1, 1, model_dim), jnp.float32)
    na_b = 0.05 * jax.random.normal(ks[7], (1, 1, model_dim), jnp.float32)
    ni_w = 1.0 + 0.1 * jax.random.normal(ks[8], (1, 1, model_dim), jnp.float32)
    ni_b = 0.05 * jax.random.normal(ks[9], (1, 1, model_dim), jnp.float32)
    delta = jnp.ones((1,), jnp.float32)
    return dict(num_heads=num_heads, maxlen=maxlen,
                wq=wq, bq=bq, wk=wk, bk=bk, wv=wv, bv=bv,
                wo=wo, bo=bo, wi=wi, bi=bi, wo2=wo2, bo2=bo2,
                na_w=na_w, na_b=na_b, ni_w=ni_w, ni_b=ni_b, delta=delta)


if __name__ == "__main__":
    # TransformerLayer(num_heads=2, model_dim=32, fn_dim=64, maxlen=16), T=8.
    B, H, C, FN, T, L = 2, 2, 32, 64, 8, 16
    dh = C // H
    key = jax.random.PRNGKey(0)
    params = init_params(key, H, C, FN, L)
    x1 = jax.random.normal(jax.random.fold_in(key, 1), (B, C, T), jnp.float32)
    x2 = jax.random.normal(jax.random.fold_in(key, 2), (B, C, T), jnp.float32)

    # Pallas path: head-interleaved (B, L, C) cache. Two chained calls exercise
    # both the zero and non-zero K/V-cache paths.
    bk0 = jnp.zeros((B, L, C), jnp.float32)
    bv0 = jnp.zeros((B, L, C), jnp.float32)
    y1, bk1, bv1 = transformer_layer_forward(x1, params, bk0, bv0)
    y2, bk2, bv2 = transformer_layer_forward(x2, params, bk1, bv1)
    jax.block_until_ready((y1, y2, bk2, bv2))

    # Reference path: module cache layout (H*B, L, dh).
    rbk0 = jnp.zeros((H * B, L, dh), jnp.float32)
    rbv0 = jnp.zeros((H * B, L, dh), jnp.float32)
    ry1, rbk1, rbv1 = _ref_forward(x1, params, rbk0, rbv0)
    ry2, rbk2, rbv2 = _ref_forward(x2, params, rbk1, rbv1)

    def to_module_cache(cache):
        return jnp.transpose(cache.reshape(B, L, H, dh),
                             (2, 0, 1, 3)).reshape(H * B, L, dh)

    # Tolerance accounts for MXU pass precision vs the XLA "highest" reference.
    tol = dict(atol=2e-2, rtol=2e-2)
    assert y1.shape == (B, C, T) and y2.shape == (B, C, T)
    assert jnp.allclose(y1, ry1, **tol)
    assert jnp.allclose(y2, ry2, **tol)
    assert jnp.allclose(to_module_cache(bk1), rbk1, **tol)
    assert jnp.allclose(to_module_cache(bv1), rbv1, **tol)
    assert jnp.allclose(to_module_cache(bk2), rbk2, **tol)
    assert jnp.allclose(to_module_cache(bv2), rbv2, **tol)

    print("KERNEL_OK")
</pallas_src>

<mosaic_0001>
module attributes {stable_mosaic.version = 11 : i64} {
  func.func @_qkv_attn_kernel(%arg0: i32, %arg1: memref<1x32x8xf32, #tpu.memory_space<vmem>>, %arg2: memref<1x16x32xf32, #tpu.memory_space<vmem>>, %arg3: memref<1x16x32xf32, #tpu.memory_space<vmem>>, %arg4: memref<32x96xf32, #tpu.memory_space<vmem>>, %arg5: memref<1x96xf32, #tpu.memory_space<vmem>>, %arg6: memref<8x16xf32, #tpu.memory_space<vmem>>, %arg7: memref<1x8x32xf32, #tpu.memory_space<vmem>>, %arg8: memref<1x16x32xf32, #tpu.memory_space<vmem>>, %arg9: memref<1x16x32xf32, #tpu.memory_space<vmem>>) attributes {dimension_semantics = [#tpu.dimension_semantics<parallel>], iteration_bounds = array<i64: 2>, scalar_prefetch = 0 : i64, scratch_operands = 0 : i64, tpu.core_type = #tpu.core_type<tc>, window_params = [{transform_indices = @transform_0, window_bounds = array<i64: 1, 32, 8>}, {transform_indices = @transform_1, window_bounds = array<i64: 1, 16, 32>}, {transform_indices = @transform_2, window_bounds = array<i64: 1, 16, 32>}, {pipeline_mode = #tpu.pipeline_mode<synchronous>, transform_indices = @transform_3, window_bounds = array<i64: 32, 96>}, {pipeline_mode = #tpu.pipeline_mode<synchronous>, transform_indices = @transform_4, window_bounds = array<i64: 1, 96>}, {pipeline_mode = #tpu.pipeline_mode<synchronous>, transform_indices = @transform_5, window_bounds = array<i64: 8, 16>}, {transform_indices = @transform_6, window_bounds = array<i64: 1, 8, 32>}, {transform_indices = @transform_7, window_bounds = array<i64: 1, 16, 32>}, {transform_indices = @transform_8, window_bounds = array<i64: 1, 16, 32>}]} {
    %c0 = arith.constant 0 : index
    %c0_0 = arith.constant 0 : index
    %c0_1 = arith.constant 0 : index
    %0 = vector.load %arg1[%c0, %c0_0, %c0_1] : memref<1x32x8xf32, #tpu.memory_space<vmem>>, vector<1x32x8xf32>
    %1 = tpu.transpose %0, [0, 2, 1] : vector<1x32x8xf32> -> vector<1x8x32xf32>
    %2 = vector.shape_cast %1 : vector<1x8x32xf32> to vector<8x32xf32>
    %c0_2 = arith.constant 0 : index
    %c0_3 = arith.constant 0 : index
    %3 = vector.load %arg4[%c0_2, %c0_3] : memref<32x96xf32, #tpu.memory_space<vmem>>, vector<32x96xf32>
    %cst = arith.constant dense<0.000000e+00> : vector<8x96xf32>
    %4 = tpu.matmul %2, %3, %cst {dimension_numbers = #tpu.dot_dimension_numbers<[1], [0], [0], [1], [0, 0, 1, 1], [], []>} : vector<8x32xf32>, vector<32x96xf32>, vector<8x96xf32> -> vector<8x96xf32>
    %c0_4 = arith.constant 0 : index
    %c0_5 = arith.constant 0 : index
    %5 = vector.load %arg5[%c0_4, %c0_5] : memref<1x96xf32, #tpu.memory_space<vmem>>, vector<1x96xf32>
    %6 = vector.broadcast %5 : vector<1x96xf32> to vector<8x96xf32>
    %7 = arith.addf %4, %6 : vector<8x96xf32>
    %8 = vector.extract_strided_slice %7 {offsets = [0, 0], sizes = [8, 32], strides = [1, 1]} : vector<8x96xf32> to vector<8x32xf32>
    %9 = vector.shape_cast %8 : vector<8x32xf32> to vector<1x8x32xf32>
    %10 = vector.extract_strided_slice %7 {offsets = [0, 32], sizes = [8, 32], strides = [1, 1]} : vector<8x96xf32> to vector<8x32xf32>
    %11 = vector.shape_cast %10 : vector<8x32xf32> to vector<1x8x32xf32>
    %12 = vector.extract_strided_slice %7 {offsets = [0, 64], sizes = [8, 32], strides = [1, 1]} : vector<8x96xf32> to vector<8x32xf32>
    %13 = vector.shape_cast %12 : vector<8x32xf32> to vector<1x8x32xf32>
    %c0_6 = arith.constant 0 : index
    %c8 = arith.constant 8 : index
    %c0_7 = arith.constant 0 : index
    %14 = vector.load %arg2[%c0_6, %c8, %c0_7] : memref<1x16x32xf32, #tpu.memory_space<vmem>>, vector<1x8x32xf32>
    %c0_8 = arith.constant 0 : index
    %c0_9 = arith.constant 0 : index
    %c0_10 = arith.constant 0 : index
    %15 = vector.load %arg8[%c0_8, %c0_9, %c0_10] : memref<1x16x32xf32, #tpu.memory_space<vmem>>, vector<1x8x32xf32>
    tpu.vector_store %arg8[%c0_8, %c0_9, %c0_10], %14 {strides = array<i32>} : memref<1x16x32xf32, #tpu.memory_space<vmem>>, vector<1x8x32xf32>,
    %c0_11 = arith.constant 0 : index
    %c8_12 = arith.constant 8 : index
    %c0_13 = arith.constant 0 : index
    %16 = vector.load %arg3[%c0_11, %c8_12, %c0_13] : memref<1x16x32xf32, #tpu.memory_space<vmem>>, vector<1x8x32xf32>
    %c0_14 = arith.constant 0 : index
    %c0_15 = arith.constant 0 : index
    %c0_16 = arith.constant 0 : index
    %17 = vector.load %arg9[%c0_14, %c0_15, %c0_16] : memref<1x16x32xf32, #tpu.memory_space<vmem>>, vector<1x8x32xf32>
    tpu.vector_store %arg9[%c0_14, %c0_15, %c0_16], %16 {strides = array<i32>} : memref<1x16x32xf32, #tpu.memory_space<vmem>>, vector<1x8x32xf32>,
    %c0_17 = arith.constant 0 : index
    %c8_18 = arith.constant 8 : index
    %c0_19 = arith.constant 0 : index
    %18 = vector.load %arg8[%c0_17, %c8_18, %c0_19] : memref<1x16x32xf32, #tpu.memory_space<vmem>>, vector<1x8x32xf32>
    tpu.vector_store %arg8[%c0_17, %c8_18, %c0_19], %11 {strides = array<i32>} : memref<1x16x32xf32, #tpu.memory_space<vmem>>, vector<1x8x32xf32>,
    %c0_20 = arith.constant 0 : index
    %c8_21 = arith.constant 8 : index
    %c0_22 = arith.constant 0 : index
    %19 = vector.load %arg9[%c0_20, %c8_21, %c0_22] : memref<1x16x32xf32, #tpu.memory_space<vmem>>, vector<1x8x32xf32>
    tpu.vector_store %arg9[%c0_20, %c8_21, %c0_22], %13 {strides = array<i32>} : memref<1x16x32xf32, #tpu.memory_space<vmem>>, vector<1x8x32xf32>,
    %c0_23 = arith.constant 0 : index
    %c0_24 = arith.constant 0 : index
    %c0_25 = arith.constant 0 : index
    %20 = vector.load %arg8[%c0_23, %c0_24, %c0_25] : memref<1x16x32xf32, #tpu.memory_space<vmem>>, vector<1x16x32xf32>
    %c0_26 = arith.constant 0 : index
    %c0_27 = arith.constant 0 : index
    %c0_28 = arith.constant 0 : index
    %21 = vector.load %arg9[%c0_26, %c0_27, %c0_28] : memref<1x16x32xf32, #tpu.memory_space<vmem>>, vector<1x16x32xf32>
    %c0_29 = arith.constant 0 : index
    %c0_30 = arith.constant 0 : index
    %22 = vector.load %arg6[%c0_29, %c0_30] : memref<8x16xf32, #tpu.memory_space<vmem>>, vector<8x16xf32>
    %23 = vector.extract_strided_slice %9 {offsets = [0, 0, 0], sizes = [1, 8, 16], strides = [1, 1, 1]} : vector<1x8x32xf32> to vector<1x8x16xf32>
    %24 = vector.extract_strided_slice %20 {offsets = [0, 0, 0], sizes = [1, 16, 16], strides = [1, 1, 1]} : vector<1x16x32xf32> to vector<1x16x16xf32>
    "tpu.trace_start"() <{level = 10 : i32, message = "btd,bld->btl"}> : () -> ()
    %cst_31 = arith.constant dense<0.000000e+00> : vector<1x8x16xf32>
    %25 = tpu.matmul %23, %24, %cst_31 {dimension_numbers = #tpu.dot_dimension_numbers<[2], [2], [1], [1], [0, 0, 0, 1, 1, 1], [0], [0]>} : vector<1x8x16xf32>, vector<1x16x16xf32>, vector<1x8x16xf32> -> vector<1x8x16xf32>
    "tpu.trace_stop"() : () -> ()
    %26 = vector.shape_cast %22 : vector<8x16xf32> to vector<1x8x16xf32>
    %27 = arith.mulf %25, %26 : vector<1x8x16xf32>
    %28 = math.absf %27 : vector<1x8x16xf32>
    %cst_32 = arith.constant dense<0xFF800000> : vector<1x8xf32>
    %29 = vector.multi_reduction <maximumf>, %28, %cst_32 [2] : vector<1x8x16xf32> to vector<1x8xf32>
    %30 = vector.shape_cast %29 : vector<1x8xf32> to vector<1x8x1xf32>
    %31 = vector.broadcast %30 : vector<1x8x1xf32> to vector<1x8x16xf32>
    %32 = arith.subf %28, %31 : vector<1x8x16xf32>
    %33 = math.exp %32 : vector<1x8x16xf32>
    %cst_33 = arith.constant dense<0.000000e+00> : vector<1x8xf32>
    %34 = vector.multi_reduction <add>, %33, %cst_33 [2] : vector<1x8x16xf32> to vector<1x8xf32>
    %35 = vector.shape_cast %34 : vector<1x8xf32> to vector<1x8x1xf32>
    %36 = vector.extract_strided_slice %21 {offsets = [0, 0, 0], sizes = [1, 16, 16], strides = [1, 1, 1]} : vector<1x16x32xf32> to vector<1x16x16xf32>
    "tpu.trace_start"() <{level = 10 : i32, message = "btl,bld->btd"}> : () -> ()
    %cst_34 = arith.constant dense<0.000000e+00> : vector<1x8x16xf32>
    %37 = tpu.matmul %33, %36, %cst_34 {dimension_numbers = #tpu.dot_dimension_numbers<[2], [1], [1], [2], [0, 0, 0, 1, 1, 2], [0], [0]>} : vector<1x8x16xf32>, vector<1x16x16xf32>, vector<1x8x16xf32> -> vector<1x8x16xf32>
    "tpu.trace_stop"() : () -> ()
    %38 = tpu.reciprocal %35 {approx = true} : vector<1x8x1xf32> -> vector<1x8x1xf32>
    %39 = vector.broadcast %38 : vector<1x8x1xf32> to vector<1x8x16xf32>
    %40 = arith.mulf %37, %39 : vector<1x8x16xf32>
    %41 = vector.extract_strided_slice %9 {offsets = [0, 0, 16], sizes = [1, 8, 16], strides = [1, 1, 1]} : vector<1x8x32xf32> to vector<1x8x16xf32>
    %42 = vector.extract_strided_slice %20 {offsets = [0, 0, 16], sizes = [1, 16, 16], strides = [1, 1, 1]} : vector<1x16x32xf32> to vector<1x16x16xf32>
    "tpu.trace_start"() <{level = 10 : i32, message = "btd,bld->btl"}> : () -> ()
    %cst_35 = arith.constant dense<0.000000e+00> : vector<1x8x16xf32>
    %43 = tpu.matmul %41, %42, %cst_35 {dimension_numbers = #tpu.dot_dimension_numbers<[2], [2], [1], [1], [0, 0, 0, 1, 1, 1], [0], [0]>} : vector<1x8x16xf32>, vector<1x16x16xf32>, vector<1x8x16xf32> -> vector<1x8x16xf32>
    "tpu.trace_stop"() : () -> ()
    %44 = vector.shape_cast %22 : vector<8x16xf32> to vector<1x8x16xf32>
    %45 = arith.mulf %43, %44 : vector<1x8x16xf32>
    %46 = math.absf %45 : vector<1x8x16xf32>
    %cst_36 = arith.constant dense<0xFF800000> : vector<1x8xf32>
    %47 = vector.multi_reduction <maximumf>, %46, %cst_36 [2] : vector<1x8x16xf32> to vector<1x8xf32>
    %48 = vector.shape_cast %47 : vector<1x8xf32> to vector<1x8x1xf32>
    %49 = vector.broadcast %48 : vector<1x8x1xf32> to vector<1x8x16xf32>
    %50 = arith.subf %46, %49 : vector<1x8x16xf32>
    %51 = math.exp %50 : vector<1x8x16xf32>
    %cst_37 = arith.constant dense<0.000000e+00> : vector<1x8xf32>
    %52 = vector.multi_reduction <add>, %51, %cst_37 [2] : vector<1x8x16xf32> to vector<1x8xf32>
    %53 = vector.shape_cast %52 : vector<1x8xf32> to vector<1x8x1xf32>
    %54 = vector.extract_strided_slice %21 {offsets = [0, 0, 16], sizes = [1, 16, 16], strides = [1, 1, 1]} : vector<1x16x32xf32> to vector<1x16x16xf32>
    "tpu.trace_start"() <{level = 10 : i32, message = "btl,bld->btd"}> : () -> ()
    %cst_38 = arith.constant dense<0.000000e+00> : vector<1x8x16xf32>
    %55 = tpu.matmul %51, %54, %cst_38 {dimension_numbers = #tpu.dot_dimension_numbers<[2], [1], [1], [2], [0, 0, 0, 1, 1, 2], [0], [0]>} : vector<1x8x16xf32>, vector<1x16x16xf32>, vector<1x8x16xf32> -> vector<1x8x16xf32>
    "tpu.trace_stop"() : () -> ()
    %56 = tpu.reciprocal %53 {approx = true} : vector<1x8x1xf32> -> vector<1x8x1xf32>
    %57 = vector.broadcast %56 : vector<1x8x1xf32> to vector<1x8x16xf32>
    %58 = arith.mulf %55, %57 : vector<1x8x16xf32>
    %59 = tpu.concatenate %40, %58 in 2 : vector<1x8x16xf32>, vector<1x8x16xf32> -> vector<1x8x32xf32>
    %c0_39 = arith.constant 0 : index
    %c0_40 = arith.constant 0 : index
    %c0_41 = arith.constant 0 : index
    %60 = vector.load %arg7[%c0_39, %c0_40, %c0_41] : memref<1x8x32xf32, #tpu.memory_space<vmem>>, vector<1x8x32xf32>
    tpu.vector_store %arg7[%c0_39, %c0_40, %c0_41], %59 {strides = array<i32>} : memref<1x8x32xf32, #tpu.memory_space<vmem>>, vector<1x8x32xf32>,
    return
  }
  func.func @transform_0(%arg0: i32) -> (i32, i32, i32) {
    %c0_i32 = arith.constant 0 : i32
    %c0_i32_0 = arith.constant 0 : i32
    %c0_i32_1 = arith.constant 0 : i32
    return %arg0, %c0_i32, %c0_i32_0 : i32, i32, i32
  }
  func.func @transform_1(%arg0: i32) -> (i32, i32, i32) {
    %c0_i32 = arith.constant 0 : i32
    %c0_i32_0 = arith.constant 0 : i32
    %c0_i32_1 = arith.constant 0 : i32
    return %arg0, %c0_i32, %c0_i32_0 : i32, i32, i32
  }
  func.func @transform_2(%arg0: i32) -> (i32, i32, i32) {
    %c0_i32 = arith.constant 0 : i32
    %c0_i32_0 = arith.constant 0 : i32
    %c0_i32_1 = arith.constant 0 : i32
    return %arg0, %c0_i32, %c0_i32_0 : i32, i32, i32
  }
  func.func @transform_3(%arg0: i32) -> (i32, i32) {
    %c0_i32 = arith.constant 0 : i32
    %c0_i32_0 = arith.constant 0 : i32
    %c0_i32_1 = arith.constant 0 : i32
    return %c0_i32, %c0_i32_0 : i32, i32
  }
  func.func @transform_4(%arg0: i32) -> (i32, i32) {
    %c0_i32 = arith.constant 0 : i32
    %c0_i32_0 = arith.constant 0 : i32
    %c0_i32_1 = arith.constant 0 : i32
    return %c0_i32, %c0_i32_0 : i32, i32
  }
  func.func @transform_5(%arg0: i32) -> (i32, i32) {
    %c0_i32 = arith.constant 0 : i32
    %c0_i32_0 = arith.constant 0 : i32
    %c0_i32_1 = arith.constant 0 : i32
    return %c0_i32, %c0_i32_0 : i32, i32
  }
  func.func @transform_6(%arg0: i32) -> (i32, i32, i32) {
    %c0_i32 = arith.constant 0 : i32
    %c0_i32_0 = arith.constant 0 : i32
    %c0_i32_1 = arith.constant 0 : i32
    return %arg0, %c0_i32, %c0_i32_0 : i32, i32, i32
  }
  func.func @transform_7(%arg0: i32) -> (i32, i32, i32) {
    %c0_i32 = arith.constant 0 : i32
    %c0_i32_0 = arith.constant 0 : i32
    %c0_i32_1 = arith.constant 0 : i32
    return %arg0, %c0_i32, %c0_i32_0 : i32, i32, i32
  }
  func.func @transform_8(%arg0: i32) -> (i32, i32, i32) {
    %c0_i32 = arith.constant 0 : i32
    %c0_i32_0 = arith.constant 0 : i32
    %c0_i32_1 = arith.constant 0 : i32
    return %arg0, %c0_i32, %c0_i32_0 : i32, i32, i32
  }
}

</mosaic_0001>

<llo_original>
// kernel: tpu_custom_call.1
$region0: #{tpu_custom_call.1}
  #allocation0 [shape = 'u32[]', space=smem, size = 0x4, offset = 0x4, fixed_abs, tag = 'smem constant byte address 0x4 - core index']
  #allocation1 [shape = 'u32[144,128]{1,0:T(1,128)}', space=vmem, size = 0x12000, scoped, tag = 'internal scratch']
  %s0 = inlined_call_operand.vmem [shape: f32[2,32,8], index: 0, kind: input, shape index: {}]
  %s1 = inlined_call_operand.vmem [shape: f32[2,16,32], index: 1, kind: input, shape index: {}]
  %s2 = inlined_call_operand.vmem [shape: f32[2,16,32], index: 2, kind: input, shape index: {}]
  %s3 = inlined_call_operand.hbm [shape: f32[32,96], index: 3, kind: input, shape index: {}]
  %s4 = inlined_call_operand.vmem [shape: f32[1,96], index: 4, kind: input, shape index: {}]
  %s5 = inlined_call_operand.vmem [shape: f32[8,16], index: 5, kind: input, shape index: {}]
  %s6 = inlined_call_operand.hbm [shape: f32[2,8,32], index: 6, kind: output, shape index: {0}]
  %s7 = inlined_call_operand.hbm [shape: f32[2,16,32], index: 7, kind: output, shape index: {1}]
  %s8 = inlined_call_operand.hbm [shape: f32[2,16,32], index: 8, kind: output, shape index: {2}]
  %9 = xla_tuple %s6, %s7, %s8
  %s10 = sld [smem:[#allocation0]]
  $region77: #{tpu_custom_call.1} parent=0
    _
  %s12 = ssub.s32 1, %s10
  %s13 = scalar_select 0, %s12, %s10
  $region1: #{tpu_custom_call.1} parent=0
    #allocation2 [shape = 'u8[16384]{0}', space=vmem, size = 0x4000, scoped, tag = 'input window, operand 3, single buffered']
    #allocation3 [shape = 's32[2]{0}', space=sflag, size = 0x8, scoped, tag = 'scoped memory for tpu_custom_call.1']
    #allocation4 [shape = 's32[2]{0}', space=sflag, size = 0x8, scoped, tag = 'scoped memory for tpu_custom_call.1']
    #allocation5 [shape = 'u8[8192]{0}', space=vmem, size = 0x2000, scoped, tag = 'output window, operand 0']
    #allocation6 [shape = 'u8[16384]{0}', space=vmem, size = 0x4000, scoped, tag = 'output window, operand 1']
    #allocation7 [shape = 's32[2]{0}', space=sflag, size = 0x8, scoped, tag = 'scoped memory for tpu_custom_call.1']
    #allocation8 [shape = 'u8[16384]{0}', space=vmem, size = 0x4000, scoped, tag = 'output window, operand 2']
    %14 = vsyncpa [#allocation3], 0
    %15 = vsyncpa [#allocation4], 0
    %s16 = scalar_lea.sflag [#allocation4], 1
    %17 = vsyncpa %s16, 0
    %18 = vsyncpa [#allocation7], 0
    %s19 = scalar_lea.sflag [#allocation7], 1
    %20 = vsyncpa %s19, 0
    loop: start=0, step=1, limit=4
    $region2: #{tpu_custom_call.1} parent=1 // loop_pre_header
      _
    $region3: #{tpu_custom_call.1} parent=1 // loop_header
      %s22 = sphi 0, %s26
      %p23 = scmp.ge.s32.totalorder %s22, 4
      %s32 = sphi 0, %s34
      %s35 = sphi 0, %s32
      %s36 = sphi 0, %s35
      %s52 = sphi 0, %s36
      %s58 = sphi 0, %s60
      %s61 = sphi 0, %s58
      %s62 = sphi 0, %s61
      %s78 = sphi 0, %s62
      %s84 = sphi 0, %s86
      %s87 = sphi 0, %s84
      %s88 = sphi 0, %s87
      %s104 = sphi 0, %s88
      %s108 = sphi 0, %s108
      %s110 = sphi 0, %s108
      %s111 = sphi 0, %s110
      %s125 = sphi 0, %s111
      %s129 = sphi 0, %s129
      %s131 = sphi 0, %s129
      %s132 = sphi 0, %s131
      %s146 = sphi 0, %s132
      %s150 = sphi 0, %s150
      %s152 = sphi 0, %s150
      %s153 = sphi 0, %s152
      %s167 = sphi 0, %s153
      %s173 = sphi 0, %s175
      %s176 = sphi 0, %s173
      %s177 = sphi 0, %s176
      %s193 = sphi 0, %s177
      %s199 = sphi 0, %s201
      %s202 = sphi 0, %s199
      %s203 = sphi 0, %s202
      %s219 = sphi 0, %s203
      %s225 = sphi 0, %s227
      %s228 = sphi 0, %s225
      %s229 = sphi 0, %s228
      %s245 = sphi 0, %s229
    $region4: #{tpu_custom_call.1} parent=1 // loop_header_branch
      %25 = sbr.rel (%p23) target = $region8
    $region5: #{tpu_custom_call.1} parent=1 // loop_body
      %s27 = ssub.s32 %s22, 1
      %s28 = ssub.s32 %s22, 2
      %s29 = sadd.s32 %s22, 1
      %s30 = ssub.s32 %s22, %s29
      %p31 = scmp.eq.s32.totalorder %s30, 0
      %s33 = sadd.s32 %s32, 1
      %s34 = scalar_select %p31, %s32, %s33
      %p37 = pneg %p31
      %p38 = scmp.eq.s32.totalorder %s22, 1
      %p39 = por %p37, %p38
      %p40 = scmp.ne.s32.totalorder %s32, %s35
      %p41 = scmp.eq.s32.totalorder %s22, 0
      %p42 = por %p40, %p41
      %p43 = scmp.ne.s32.totalorder %s32, %s35
      %p44 = scmp.eq.s32.totalorder %s27, 1
      %p45 = por %p43, %p44
      %p46 = scmp.ne.s32.totalorder %s35, %s36
      %p47 = scmp.eq.s32.totalorder %s27, 0
      %p48 = por %p46, %p47
      %p49 = scmp.ne.s32.totalorder %s35, %s36
      %p50 = scmp.eq.s32.totalorder %s28, 1
      %p51 = por %p49, %p50
      %p53 = scmp.ne.s32.totalorder %s36, %s52
      %p54 = scmp.eq.s32.totalorder %s28, 0
      %p55 = por %p53, %p54
      %s56 = ssub.s32 %s22, %s29
      %p57 = scmp.eq.s32.totalorder %s56, 0
      %s59 = sadd.s32 %s58, 1
      %s60 = scalar_select %p57, %s58, %s59
      %p63 = pneg %p57
      %p64 = scmp.eq.s32.totalorder %s22, 1
      %p65 = por %p63, %p64
      %p66 = scmp.ne.s32.totalorder %s58, %s61
      %p67 = scmp.eq.s32.totalorder %s22, 0
      %p68 = por %p66, %p67
      %p69 = scmp.ne.s32.totalorder %s58, %s61
      %p70 = scmp.eq.s32.totalorder %s27, 1
      %p71 = por %p69, %p70
      %p72 = scmp.ne.s32.totalorder %s61, %s62
      %p73 = scmp.eq.s32.totalorder %s27, 0
      %p74 = por %p72, %p73
      %p75 = scmp.ne.s32.totalorder %s61, %s62
      %p76 = scmp.eq.s32.totalorder %s28, 1
      %p77 = por %p75, %p76
      %p79 = scmp.ne.s32.totalorder %s62, %s78
      %p80 = scmp.eq.s32.totalorder %s28, 0
      %p81 = por %p79, %p80
      %s82 = ssub.s32 %s22, %s29
      %p83 = scmp.eq.s32.totalorder %s82, 0
      %s85 = sadd.s32 %s84, 1
      %s86 = scalar_select %p83, %s84, %s85
      %p89 = pneg %p83
      %p90 = scmp.eq.s32.totalorder %s22, 1
      %p91 = por %p89, %p90
      %p92 = scmp.ne.s32.totalorder %s84, %s87
      %p93 = scmp.eq.s32.totalorder %s22, 0
      %p94 = por %p92, %p93
      %p95 = scmp.ne.s32.totalorder %s84, %s87
      %p96 = scmp.eq.s32.totalorder %s27, 1
      %p97 = por %p95, %p96
      %p98 = scmp.ne.s32.totalorder %s87, %s88
      %p99 = scmp.eq.s32.totalorder %s27, 0
      %p100 = por %p98, %p99
      %p101 = scmp.ne.s32.totalorder %s87, %s88
      %p102 = scmp.eq.s32.totalorder %s28, 1
      %p103 = por %p101, %p102
      %p105 = scmp.ne.s32.totalorder %s88, %s104
      %p106 = scmp.eq.s32.totalorder %s28, 0
      %p107 = por %p105, %p106
      %s109 = sadd.s32 %s108, 1
      %p112 = scmp.eq.s32.totalorder %s22, 1
      %p113 = scmp.ne.s32.totalorder %s108, %s110
      %p114 = scmp.eq.s32.totalorder %s22, 0
      %p115 = por %p113, %p114
      %p116 = scmp.ne.s32.totalorder %s108, %s110
      %p117 = scmp.eq.s32.totalorder %s27, 1
      %p118 = por %p116, %p117
      %p119 = scmp.ne.s32.totalorder %s110, %s111
      %p120 = scmp.eq.s32.totalorder %s27, 0
      %p121 = por %p119, %p120
      %p122 = scmp.ne.s32.totalorder %s110, %s111
      %p123 = scmp.eq.s32.totalorder %s28, 1
      %p124 = por %p122, %p123
      %p126 = scmp.ne.s32.totalorder %s111, %s125
      %p127 = scmp.eq.s32.totalorder %s28, 0
      %p128 = por %p126, %p127
      %s130 = sadd.s32 %s129, 1
      %p133 = scmp.eq.s32.totalorder %s22, 1
      %p134 = scmp.ne.s32.totalorder %s129, %s131
      %p135 = scmp.eq.s32.totalorder %s22, 0
      %p136 = por %p134, %p135
      %p137 = scmp.ne.s32.totalorder %s129, %s131
      %p138 = scmp.eq.s32.totalorder %s27, 1
      %p139 = por %p137, %p138
      %p140 = scmp.ne.s32.totalorder %s131, %s132
      %p141 = scmp.eq.s32.totalorder %s27, 0
      %p142 = por %p140, %p141
      %p143 = scmp.ne.s32.totalorder %s131, %s132
      %p144 = scmp.eq.s32.totalorder %s28, 1
      %p145 = por %p143, %p144
      %p147 = scmp.ne.s32.totalorder %s132, %s146
      %p148 = scmp.eq.s32.totalorder %s28, 0
      %p149 = por %p147, %p148
      %s151 = sadd.s32 %s150, 1
      %p154 = scmp.eq.s32.totalorder %s22, 1
      %p155 = scmp.ne.s32.totalorder %s150, %s152
      %p156 = scmp.eq.s32.totalorder %s22, 0
      %p157 = por %p155, %p156
      %p158 = scmp.ne.s32.totalorder %s150, %s152
      %p159 = scmp.eq.s32.totalorder %s27, 1
      %p160 = por %p158, %p159
      %p161 = scmp.ne.s32.totalorder %s152, %s153
      %p162 = scmp.eq.s32.totalorder %s27, 0
      %p163 = por %p161, %p162
      %p164 = scmp.ne.s32.totalorder %s152, %s153
      %p165 = scmp.eq.s32.totalorder %s28, 1
      %p166 = por %p164, %p165
      %p168 = scmp.ne.s32.totalorder %s153, %s167
      %p169 = scmp.eq.s32.totalorder %s28, 0
      %p170 = por %p168, %p169
      %s171 = ssub.s32 %s22, %s29
      %p172 = scmp.eq.s32.totalorder %s171, 0
      %s174 = sadd.s32 %s173, 1
      %s175 = scalar_select %p172, %s173, %s174
      %p178 = pneg %p172
      %p179 = scmp.eq.s32.totalorder %s22, 1
      %p180 = por %p178, %p179
      %p181 = scmp.ne.s32.totalorder %s173, %s176
      %p182 = scmp.eq.s32.totalorder %s22, 0
      %p183 = por %p181, %p182
      %p184 = scmp.ne.s32.totalorder %s173, %s176
      %p185 = scmp.eq.s32.totalorder %s27, 1
      %p186 = por %p184, %p185
      %p187 = scmp.ne.s32.totalorder %s176, %s177
      %p188 = scmp.eq.s32.totalorder %s27, 0
      %p189 = por %p187, %p188
      %p190 = scmp.ne.s32.totalorder %s176, %s177
      %p191 = scmp.eq.s32.totalorder %s28, 1
      %p192 = por %p190, %p191
      %p194 = scmp.ne.s32.totalorder %s177, %s193
      %p195 = scmp.eq.s32.totalorder %s28, 0
      %p196 = por %p194, %p195
      %s197 = ssub.s32 %s22, %s29
      %p198 = scmp.eq.s32.totalorder %s197, 0
      %s200 = sadd.s32 %s199, 1
      %s201 = scalar_select %p198, %s199, %s200
      %p204 = pneg %p198
      %p205 = scmp.eq.s32.totalorder %s22, 1
      %p206 = por %p204, %p205
      %p207 = scmp.ne.s32.totalorder %s199, %s202
      %p208 = scmp.eq.s32.totalorder %s22, 0
      %p209 = por %p207, %p208
      %p210 = scmp.ne.s32.totalorder %s199, %s202
      %p211 = scmp.eq.s32.totalorder %s27, 1
      %p212 = por %p210, %p211
      %p213 = scmp.ne.s32.totalorder %s202, %s203
      %p214 = scmp.eq.s32.totalorder %s27, 0
      %p215 = por %p213, %p214
      %p216 = scmp.ne.s32.totalorder %s202, %s203
      %p217 = scmp.eq.s32.totalorder %s28, 1
      %p218 = por %p216, %p217
      %p220 = scmp.ne.s32.totalorder %s203, %s219
      %p221 = scmp.eq.s32.totalorder %s28, 0
      %p222 = por %p220, %p221
      %s223 = ssub.s32 %s22, %s29
      %p224 = scmp.eq.s32.totalorder %s223, 0
      %s226 = sadd.s32 %s225, 1
      %s227 = scalar_select %p224, %s225, %s226
      %p230 = pneg %p224
      %p231 = scmp.eq.s32.totalorder %s22, 1
      %p232 = por %p230, %p231
      %p233 = scmp.ne.s32.totalorder %s225, %s228
      %p234 = scmp.eq.s32.totalorder %s22, 0
      %p235 = por %p233, %p234
      %p236 = scmp.ne.s32.totalorder %s225, %s228
      %p237 = scmp.eq.s32.totalorder %s27, 1
      %p238 = por %p236, %p237
      %p239 = scmp.ne.s32.totalorder %s228, %s229
      %p240 = scmp.eq.s32.totalorder %s27, 0
      %p241 = por %p239, %p240
      %p242 = scmp.ne.s32.totalorder %s228, %s229
      %p243 = scmp.eq.s32.totalorder %s28, 1
      %p244 = por %p242, %p243
      %p246 = scmp.ne.s32.totalorder %s229, %s245
      %p247 = scmp.eq.s32.totalorder %s28, 0
      %p248 = por %p246, %p247
      %p249 = scmp.le.s32.totalorder 1, %s22
      %p250 = scmp.lt.s32.totalorder %s22, 3
      %p251 = pnand %p249, %p250
      %p252 = pneg %p251
      // Predicated region
      $region9: #{tpu_custom_call.1} parent=5 // pred_check
        _
      $region10: #{tpu_custom_call.1} parent=5 // pred_check_branch
        %254 = sbr.rel (%p251) target = $region12
      $region11: #{tpu_custom_call.1} parent=5 // pred_region
        %s255 = ssub.s32 %s22, 1
        // Predicated region
        $region13: #{tpu_custom_call.1} parent=11 // pred_check
          %p256 = pneg %p121
        $region14: #{tpu_custom_call.1} parent=11 // pred_check_branch
          %258 = sbr.rel (%p256) target = $region16
        $region15: #{tpu_custom_call.1} parent=11 // pred_region
          %s260 = ssub.s32 512, 512
          %261 = vsyncadd [#allocation3], %s260
          %s262 = sshll.u32 [#allocation2], 4
          %s263 = int_to_ptr.vmem [resolvable:$true] %s262
          %268 = dma.hbm_to_vmem [thread:$0]  %s3, 512, %s263, [#allocation3], 128, 128, 8
        $region16: #{tpu_custom_call.1} parent=11 // pred_fallthru
          _
        // Predicated region
        $region17: #{tpu_custom_call.1} parent=11 // pred_check
          %p269 = pneg %p142
        $region18: #{tpu_custom_call.1} parent=11 // pred_check_branch
          %271 = sbr.rel (%p269) target = $region20
        $region19: #{tpu_custom_call.1} parent=11 // pred_region
          _
        $region20: #{tpu_custom_call.1} parent=11 // pred_fallthru
          _
        // Predicated region
        $region21: #{tpu_custom_call.1} parent=11 // pred_check
          %p272 = pneg %p163
        $region22: #{tpu_custom_call.1} parent=11 // pred_check_branch
          %274 = sbr.rel (%p272) target = $region24
        $region23: #{tpu_custom_call.1} parent=11 // pred_region
          _
        $region24: #{tpu_custom_call.1} parent=11 // pred_fallthru
          _
      $region12: #{tpu_custom_call.1} parent=5 // pred_fallthru
        _
      %p275 = scmp.lt.s32.totalorder %s22, 2
      // Predicated region
      $region25: #{tpu_custom_call.1} parent=5 // pred_check
        %p276 = pneg %p275
      $region26: #{tpu_custom_call.1} parent=5 // pred_check_branch
        %278 = sbr.rel (%p276) target = $region28
      $region27: #{tpu_custom_call.1} parent=5 // pred_region
        // Predicated region
        $region29: #{tpu_custom_call.1} parent=27 // pred_check
          %p279 = pneg %p42
        $region30: #{tpu_custom_call.1} parent=27 // pred_check_branch
          %281 = sbr.rel (%p279) target = $region32
        $region31: #{tpu_custom_call.1} parent=27 // pred_region
          %p282 = scmp.lt.s32.totalorder %s22, 1
          %s283 = scalar_select %p282, %s22, 1
          %s284 = smul.addr %s283, 4
          %s285 = smul.addr %s284, 8
          %s286 = scalar_lea.vmem %s0, %s285
        $region32: #{tpu_custom_call.1} parent=27 // pred_fallthru
          _
        // Predicated region
        $region33: #{tpu_custom_call.1} parent=27 // pred_check
          %p287 = pneg %p68
        $region34: #{tpu_custom_call.1} parent=27 // pred_check_branch
          %289 = sbr.rel (%p287) target = $region36
        $region35: #{tpu_custom_call.1} parent=27 // pred_region
          %p290 = scmp.lt.s32.totalorder %s22, 1
          %s291 = scalar_select %p290, %s22, 1
          %s292 = smul.addr %s291, 2
          %s293 = smul.addr %s292, 8
          %s294 = scalar_lea.vmem %s1, %s293
        $region36: #{tpu_custom_call.1} parent=27 // pred_fallthru
          _
        // Predicated region
        $region37: #{tpu_custom_call.1} parent=27 // pred_check
          %p295 = pneg %p94
        $region38: #{tpu_custom_call.1} parent=27 // pred_check_branch
          %297 = sbr.rel (%p295) target = $region40
        $region39: #{tpu_custom_call.1} parent=27 // pred_region
          %p298 = scmp.lt.s32.totalorder %s22, 1
          %s299 = scalar_select %p298, %s22, 1
          %s300 = smul.addr %s299, 2
          %s301 = smul.addr %s300, 8
          %s302 = scalar_lea.vmem %s2, %s301
        $region40: #{tpu_custom_call.1} parent=27 // pred_fallthru
          _
      $region28: #{tpu_custom_call.1} parent=5 // pred_fallthru
        _
      %p303 = scmp.le.s32.totalorder 1, %s22
      %p304 = scmp.lt.s32.totalorder %s22, 3
      %p305 = pnand %p303, %p304
      %p306 = pneg %p305
      // Predicated region
      $region41: #{tpu_custom_call.1} parent=5 // pred_check
        _
      $region42: #{tpu_custom_call.1} parent=5 // pred_check_branch
        %308 = sbr.rel (%p305) target = $region44
      $region43: #{tpu_custom_call.1} parent=5 // pred_region
        %s309 = ssub.s32 %s22, 1
        // Predicated region
        $region45: #{tpu_custom_call.1} parent=43 // pred_check
          %p310 = pneg %p121
        $region46: #{tpu_custom_call.1} parent=43 // pred_check_branch
          %312 = sbr.rel (%p310) target = $region48
        $region47: #{tpu_custom_call.1} parent=43 // pred_region
          %313 = dma.done [#allocation3], 512
        $region48: #{tpu_custom_call.1} parent=43 // pred_fallthru
          _
        %p314 = scmp.lt.s32.totalorder %s27, 1
        %s315 = scalar_select %p314, %s27, 1
        %s316 = smul.addr %s315, 4
        %s317 = smul.addr %s316, 8
        %s318 = scalar_lea.vmem %s0, %s317
        %p319 = pneg %p48
        %p320 = pneg %p45
        %p321 = scmp.lt.s32.totalorder %s27, 1
        %s322 = scalar_select %p321, %s27, 1
        %s323 = smul.addr %s322, 2
        %s324 = smul.addr %s323, 8
        %s325 = scalar_lea.vmem %s1, %s324
        %p326 = pneg %p74
        %p327 = pneg %p71
        %p328 = scmp.lt.s32.totalorder %s27, 1
        %s329 = scalar_select %p328, %s27, 1
        %s330 = smul.addr %s329, 2
        %s331 = smul.addr %s330, 8
        %s332 = scalar_lea.vmem %s2, %s331
        %p333 = pneg %p100
        %p334 = pneg %p97
        %p335 = pneg %p121
        %p336 = pneg %p118
        %p337 = pneg %p142
        %p338 = pneg %p139
        %p339 = pneg %p163
        %p340 = pneg %p160
        %p341 = pneg %p189
        %p342 = pneg %p186
        %s343 = sand.u32 %s176, 1
        %s344 = scalar_lea.sflag [#allocation4], %s343
        %s345 = sand.u32 %s176, 1
        %s346 = smul.addr %s345, 8
        %s347 = scalar_lea.vmem [#allocation5], %s346
        %p348 = pneg %p215
        %p349 = pneg %p212
        %s350 = sand.u32 %s27, 1
        %s351 = scalar_lea.sflag [#allocation7], %s350
        %s352 = sand.u32 %s202, 1
        %s353 = smul.addr %s352, 16
        %s354 = scalar_lea.vmem [#allocation6], %s353
        %p355 = pneg %p241
        %p356 = pneg %p238
        %s357 = sand.u32 %s27, 1
        %s358 = scalar_lea.sflag [#allocation7], %s357
        %s359 = sand.u32 %s228, 1
        %s360 = smul.addr %s359, 16
        %s361 = scalar_lea.vmem [#allocation8], %s360
        %p362 = scmp.lt.s32.totalorder %s27, 1
        %s363 = scalar_select %p362, %s27, 1
        %s364 = smul.addr %s363, 4
        %s365 = smul.addr %s364, 8
        %s366 = scalar_lea.vmem %s0, %s365
        %p367 = scmp.lt.s32.totalorder %s27, 1
        %s368 = scalar_select %p367, %s27, 1
        %s369 = smul.addr %s368, 2
        %s370 = smul.addr %s369, 8
        %s371 = scalar_lea.vmem %s1, %s370
        %p372 = scmp.lt.s32.totalorder %s27, 1
        %s373 = scalar_select %p372, %s27, 1
        %s374 = smul.addr %s373, 2
        %s375 = smul.addr %s374, 8
        %s376 = scalar_lea.vmem %s2, %s375
        %v377 = vld [vmem:[%s366] sm:$0xff]
        %v378 = vld [vmem:[%s366 + $0x8] sm:$0xff]
        %v379 = vld [vmem:[%s366 + $0x10] sm:$0xff]
        %v380 = vld [vmem:[%s366 + $0x18] sm:$0xff]
        %381 = vxpose.xlu0.b32.start [1/16] %v377, 128
        %382 = vxpose.xlu0.b32.cont [2/16] %v378, 128
        %383 = vxpose.xlu0.b32.cont [3/16] %v379, 128
        %384 = vxpose.xlu0.b32.cont [4/16] %v380, 128
        %385 = vxpose.xlu0.b32.cont [5/16] 0.0, 128
        %386 = vxpose.xlu0.b32.cont [6/16] 0.0, 128
        %387 = vxpose.xlu0.b32.cont [7/16] 0.0, 128
        %388 = vxpose.xlu0.b32.cont [8/16] 0.0, 128
        %389 = vxpose.xlu0.b32.cont [9/16] 0.0, 128
        %390 = vxpose.xlu0.b32.cont [10/16] 0.0, 128
        %391 = vxpose.xlu0.b32.cont [11/16] 0.0, 128
        %392 = vxpose.xlu0.b32.cont [12/16] 0.0, 128
        %393 = vxpose.xlu0.b32.cont [13/16] 0.0, 128
        %394 = vxpose.xlu0.b32.cont [14/16] 0.0, 128
        %395 = vxpose.xlu0.b32.cont [15/16] 0.0, 128
        %396 = vxpose.xlu0.b32.end [16/16] 0.0, 128
        %v397 = vpop.trf.xlu0
        %v398 = vpop.trf.xlu0
        %v399 = vpop.trf.xlu0
        %v400 = vpop.trf.xlu0
        %v401 = vpop.trf.xlu0
        %v402 = vpop.trf.xlu0
        %v403 = vpop.trf.xlu0
        %v404 = vpop.trf.xlu0
        %v405 = vpop.trf.xlu0
        %v406 = vpop.trf.xlu0
        %v407 = vpop.trf.xlu0
        %v408 = vpop.trf.xlu0
        %v409 = vpop.trf.xlu0
        %v410 = vpop.trf.xlu0
        %v411 = vpop.trf.xlu0
        %v412 = vpop.trf.xlu0
        %v413 = vld [vmem:[#allocation2] sm:$0xff]
        %v414 = vld [vmem:[#allocation2 + $0x8] sm:$0xff]
        %v415 = vld [vmem:[#allocation2 + $0x10] sm:$0xff]
        %v416 = vld [vmem:[#allocation2 + $0x18] sm:$0xff]
        %v417 = vld [vmem:[%s4] sm:$0x1]
        %v419 = vlaneseq
        %v420 = vshrl.u32 %v419, 7
        %v421 = vsub.s32 0, %v420
        %v422 = vrot.slane %v417, %v421
        %vm424 = vcmask 261120
        %v426 = vsel %vm424, %v397, 0
        %428 = vmatprep.subr.mxu0 0.0
        %429 = vmatpush1.msra.mxu0 0.0
        %430 = vmatprep.subr.mxu0 0.0
        %431 = vmatpush1.msra.mxu0 0.0
        %432 = vmatprep.subr.mxu0 0.0
        %433 = vmatpush1.msra.mxu0 0.0
        %434 = vmatprep.subr.mxu0 0.0
        %435 = vmatpush1.msra.mxu0 0.0
        %436 = vmatprep.subr.mxu0 0.0
        %437 = vmatpush1.msra.mxu0 0.0
        %438 = vmatprep.subr.mxu0 0.0
        %439 = vmatpush1.msra.mxu0 0.0
        %440 = vmatprep.subr.mxu0 0.0
        %441 = vmatpush1.msra.mxu0 0.0
        %442 = vmatprep.subr.mxu0 0.0
        %443 = vmatpush1.msra.mxu0 0.0
        %444 = vmatprep.subr.mxu0 0.0
        %445 = vmatpush1.msra.mxu0 0.0
        %446 = vmatprep.subr.mxu0 0.0
        %447 = vmatpush1.msra.mxu0 0.0
        %448 = vmatprep.subr.mxu0 0.0
        %449 = vmatpush1.msra.mxu0 0.0
        %450 = vmatprep.subr.mxu0 0.0
        %451 = vmatpush1.msra.mxu0 0.0
        %452 = vmatprep.subr.mxu0 0.0
        %453 = vmatpush1.msra.mxu0 %v416
        %454 = vmatprep.subr.mxu0 0.0
        %455 = vmatpush1.msra.mxu0 %v415
        %456 = vmatprep.subr.mxu0 0.0
        %457 = vmatpush1.msra.mxu0 %v414
        %458 = vmatprep.subr.mxu0 0.0
        %459 = vmatpush1.msra.mxu0 %v413
        %460 = vmatprep.subr.mxu0 0.0
        %461 = vmatpush2.msra.mxu0 0.0
        %462 = vmatprep.subr.mxu0 0.0
        %463 = vmatpush2.msra.mxu0 0.0
        %464 = vmatprep.subr.mxu0 0.0
        %465 = vmatpush2.msra.mxu0 0.0
        %466 = vmatprep.subr.mxu0 0.0
        %467 = vmatpush2.msra.mxu0 0.0
        %468 = vmatprep.subr.mxu0 0.0
        %469 = vmatpush2.msra.mxu0 0.0
        %470 = vmatprep.subr.mxu0 0.0
        %471 = vmatpush2.msra.mxu0 0.0
        %472 = vmatprep.subr.mxu0 0.0
        %473 = vmatpush2.msra.mxu0 0.0
        %474 = vmatprep.subr.mxu0 0.0
        %475 = vmatpush2.msra.mxu0 0.0
        %476 = vmatprep.subr.mxu0 0.0
        %477 = vmatpush2.msra.mxu0 0.0
        %478 = vmatprep.subr.mxu0 0.0
        %479 = vmatpush2.msra.mxu0 0.0
        %480 = vmatprep.subr.mxu0 0.0
        %481 = vmatpush2.msra.mxu0 0.0
        %482 = vmatprep.subr.mxu0 0.0
        %483 = vmatpush2.msra.mxu0 0.0
        %484 = vmatprep.subr.mxu0 0.0
        %485 = vmatpush2.msra.mxu0 0.0
        %486 = vmatprep.subr.mxu0 0.0
        %487 = vmatpush2.msra.mxu0 0.0
        %488 = vmatprep.subr.mxu0 0.0
        %489 = vmatpush2.msra.mxu0 0.0
        %490 = vmatprep.subr.mxu0 0.0
        %491 = vmatpush2.msra.mxu0 0.0
        %492 = vmatprep.mubr.f32.mxu0 0.0
        %493 = vmatmul.mubr.f32.gmra.mxu0 %v426
        %v494 = vpop.f32.mrf.mxu0
        %v495 = vadd.f32 %v422, %v494
        %v496 = vpop.f32.mrf.mxu0
        %497 = vdwg.mxu0
        %v498 = vld [vmem:[%s371 + $0x8] sm:$0xff]
        %499 = vst.msk [vmem:[%s354] sm:$0xff] %vm424, %v498
        %v500 = vld [vmem:[%s376 + $0x8] sm:$0xff]
        %501 = vst.msk [vmem:[%s361] sm:$0xff] %vm424, %v500
        %503 = vrot.lane.b32.xlu0 %v495, 96
        %v504 = vpop.permute.xlu0 %503
        %506 = vst.msk [vmem:[%s354 + $0x8] sm:$0xff] %vm424, %v504
        %507 = vrot.lane.b32.xlu0 %v495, 64
        %v508 = vpop.permute.xlu0 %507
        %510 = vst.msk [vmem:[%s361 + $0x8] sm:$0xff] %vm424, %v508
        %v511 = vld [vmem:[%s354] sm:$0xff]
        %v512 = vld [vmem:[%s354 + $0x8] sm:$0xff]
        %v513 = vld [vmem:[%s361] sm:$0xff]
        %v514 = vld [vmem:[%s361 + $0x8] sm:$0xff]
        %v515 = vld [vmem:[%s5] sm:$0xff]
        %vm516 = vcmask 130048
        %v517 = vsel %vm516, %v495, 0
        %v520 = vsel %vm516, %v511, 0
        %v523 = vsel %vm516, %v512, 0
        %525 = vmatprep.subr.mxu0 0.0
        %526 = vmatpush1.xpose.msra.mxu0 0.0
        %527 = vmatprep.subr.mxu0 0.0
        %528 = vmatpush1.xpose.msra.mxu0 0.0
        %529 = vmatprep.subr.mxu0 0.0
        %530 = vmatpush1.xpose.msra.mxu0 0.0
        %531 = vmatprep.subr.mxu0 0.0
        %532 = vmatpush1.xpose.msra.mxu0 0.0
        %533 = vmatprep.subr.mxu0 0.0
        %534 = vmatpush1.xpose.msra.mxu0 0.0
        %535 = vmatprep.subr.mxu0 0.0
        %536 = vmatpush1.xpose.msra.mxu0 0.0
        %537 = vmatprep.subr.mxu0 0.0
        %538 = vmatpush1.xpose.msra.mxu0 0.0
        %539 = vmatprep.subr.mxu0 0.0
        %540 = vmatpush1.xpose.msra.mxu0 0.0
        %541 = vmatprep.subr.mxu0 0.0
        %542 = vmatpush1.xpose.msra.mxu0 0.0
        %543 = vmatprep.subr.mxu0 0.0
        %544 = vmatpush1.xpose.msra.mxu0 0.0
        %545 = vmatprep.subr.mxu0 0.0
        %546 = vmatpush1.xpose.msra.mxu0 0.0
        %547 = vmatprep.subr.mxu0 0.0
        %548 = vmatpush1.xpose.msra.mxu0 0.0
        %549 = vmatprep.subr.mxu0 0.0
        %550 = vmatpush1.xpose.msra.mxu0 0.0
        %551 = vmatprep.subr.mxu0 0.0
        %552 = vmatpush1.xpose.msra.mxu0 0.0
        %553 = vmatprep.subr.mxu0 0.0
        %554 = vmatpush1.xpose.msra.mxu0 %v523
        %555 = vmatprep.subr.mxu0 0.0
        %556 = vmatpush1.xpose.msra.mxu0 %v520
        %557 = vmatprep.subr.mxu0 0.0
        %558 = vmatpush2.xpose.msra.mxu0 0.0
        %559 = vmatprep.subr.mxu0 0.0
        %560 = vmatpush2.xpose.msra.mxu0 0.0
        %561 = vmatprep.subr.mxu0 0.0
        %562 = vmatpush2.xpose.msra.mxu0 0.0
        %563 = vmatprep.subr.mxu0 0.0
        %564 = vmatpush2.xpose.msra.mxu0 0.0
        %565 = vmatprep.subr.mxu0 0.0
        %566 = vmatpush2.xpose.msra.mxu0 0.0
        %567 = vmatprep.subr.mxu0 0.0
        %568 = vmatpush2.xpose.msra.mxu0 0.0
        %569 = vmatprep.subr.mxu0 0.0
        %570 = vmatpush2.xpose.msra.mxu0 0.0
        %571 = vmatprep.subr.mxu0 0.0
        %572 = vmatpush2.xpose.msra.mxu0 0.0
        %573 = vmatprep.subr.mxu0 0.0
        %574 = vmatpush2.xpose.msra.mxu0 0.0
        %575 = vmatprep.subr.mxu0 0.0
        %576 = vmatpush2.xpose.msra.mxu0 0.0
        %577 = vmatprep.subr.mxu0 0.0
        %578 = vmatpush2.xpose.msra.mxu0 0.0
        %579 = vmatprep.subr.mxu0 0.0
        %580 = vmatpush2.xpose.msra.mxu0 0.0
        %581 = vmatprep.subr.mxu0 0.0
        %582 = vmatpush2.xpose.msra.mxu0 0.0
        %583 = vmatprep.subr.mxu0 0.0
        %584 = vmatpush2.xpose.msra.mxu0 0.0
        %585 = vmatprep.subr.mxu0 0.0
        %586 = vmatpush2.xpose.msra.mxu0 0.0
        %587 = vmatprep.subr.mxu0 0.0
        %588 = vmatpush2.xpose.msra.mxu0 0.0
        %589 = vmatprep.mubr.f32.mxu0 0.0
        %590 = vmatmul.mubr.f32.gmra.mxu0 %v517
        %v591 = vpop.f32.mrf.mxu0
        %v592 = vadd.f32 0.0, %v591
        %v593 = vpop.f32.mrf.mxu0
        %594 = vdwg.mxu0
        %v595 = vmul.f32 %v592, %v515
        %v596 = vand.u32 2147483647, %v595
        %v597 = vsel %vm516, %v596, -inf
        %598 = vmax.xlane.f32.xlu0 %v597
        %v599 = vpop.xlane.xlu0 %598
        %v600 = vsub.f32 %v596, %v599
        %v601 = vmul.f32 %v600, 1.442695
        %v602 = vpow.pop %v601
        %v603 = vsel %vm516, %v602, 0.0
        %604 = vadd.xlane.f32.xlu0 %v603
        %v605 = vpop.xlane.xlu0 %604
        %v607 = vsel %vm516, %v602, 0
        %609 = vmatprep.subr.mxu0 0.0
        %610 = vmatpush1.msra.mxu0 0.0
        %611 = vmatprep.subr.mxu0 0.0
        %612 = vmatpush1.msra.mxu0 0.0
        %613 = vmatprep.subr.mxu0 0.0
        %614 = vmatpush1.msra.mxu0 0.0
        %615 = vmatprep.subr.mxu0 0.0
        %616 = vmatpush1.msra.mxu0 0.0
        %617 = vmatprep.subr.mxu0 0.0
        %618 = vmatpush1.msra.mxu0 0.0
        %619 = vmatprep.subr.mxu0 0.0
        %620 = vmatpush1.msra.mxu0 0.0
        %621 = vmatprep.subr.mxu0 0.0
        %622 = vmatpush1.msra.mxu0 0.0
        %623 = vmatprep.subr.mxu0 0.0
        %624 = vmatpush1.msra.mxu0 0.0
        %625 = vmatprep.subr.mxu0 0.0
        %626 = vmatpush1.msra.mxu0 0.0
        %627 = vmatprep.subr.mxu0 0.0
        %628 = vmatpush1.msra.mxu0 0.0
        %629 = vmatprep.subr.mxu0 0.0
        %630 = vmatpush1.msra.mxu0 0.0
        %631 = vmatprep.subr.mxu0 0.0
        %632 = vmatpush1.msra.mxu0 0.0
        %633 = vmatprep.subr.mxu0 0.0
        %634 = vmatpush1.msra.mxu0 0.0
        %635 = vmatprep.subr.mxu0 0.0
        %636 = vmatpush1.msra.mxu0 0.0
        %637 = vmatprep.subr.mxu0 0.0
        %638 = vmatpush1.msra.mxu0 %v514
        %639 = vmatprep.subr.mxu0 0.0
        %640 = vmatpush1.msra.mxu0 %v513
        %641 = vmatprep.subr.mxu0 0.0
        %642 = vmatpush2.msra.mxu0 0.0
        %643 = vmatprep.subr.mxu0 0.0
        %644 = vmatpush2.msra.mxu0 0.0
        %645 = vmatprep.subr.mxu0 0.0
        %646 = vmatpush2.msra.mxu0 0.0
        %647 = vmatprep.subr.mxu0 0.0
        %648 = vmatpush2.msra.mxu0 0.0
        %649 = vmatprep.subr.mxu0 0.0
        %650 = vmatpush2.msra.mxu0 0.0
        %651 = vmatprep.subr.mxu0 0.0
        %652 = vmatpush2.msra.mxu0 0.0
        %653 = vmatprep.subr.mxu0 0.0
        %654 = vmatpush2.msra.mxu0 0.0
        %655 = vmatprep.subr.mxu0 0.0
        %656 = vmatpush2.msra.mxu0 0.0
        %657 = vmatprep.subr.mxu0 0.0
        %658 = vmatpush2.msra.mxu0 0.0
        %659 = vmatprep.subr.mxu0 0.0
        %660 = vmatpush2.msra.mxu0 0.0
        %661 = vmatprep.subr.mxu0 0.0
        %662 = vmatpush2.msra.mxu0 0.0
        %663 = vmatprep.subr.mxu0 0.0
        %664 = vmatpush2.msra.mxu0 0.0
        %665 = vmatprep.subr.mxu0 0.0
        %666 = vmatpush2.msra.mxu0 0.0
        %667 = vmatprep.subr.mxu0 0.0
        %668 = vmatpush2.msra.mxu0 0.0
        %669 = vmatprep.subr.mxu0 0.0
        %670 = vmatpush2.msra.mxu0 0.0
        %671 = vmatprep.subr.mxu0 0.0
        %672 = vmatpush2.msra.mxu0 0.0
        %673 = vmatprep.mubr.f32.mxu0 0.0
        %674 = vmatmul.mubr.f32.gmra.mxu0 %v607
        %v675 = vpop.f32.mrf.mxu0
        %v676 = vadd.f32 0.0, %v675
        %v677 = vpop.f32.mrf.mxu0
        %678 = vdwg.mxu0
        %v679 = vrcp.pop %v605
        %v680 = vmul.f32 %v676, %v679
        %681 = vrot.lane.b32.xlu0 %v495, 112
        %v682 = vpop.permute.xlu0 %681
        %683 = vrot.lane.b32.xlu0 %v511, 112
        %v684 = vpop.permute.xlu0 %683
        %685 = vrot.lane.b32.xlu0 %v512, 112
        %v686 = vpop.permute.xlu0 %685
        %v687 = vsel %vm516, %v682, 0
        %v689 = vsel %vm516, %v684, 0
        %v691 = vsel %vm516, %v686, 0
        %693 = vmatprep.subr.mxu0 0.0
        %694 = vmatpush1.xpose.msra.mxu0 0.0
        %695 = vmatprep.subr.mxu0 0.0
        %696 = vmatpush1.xpose.msra.mxu0 0.0
        %697 = vmatprep.subr.mxu0 0.0
        %698 = vmatpush1.xpose.msra.mxu0 0.0
        %699 = vmatprep.subr.mxu0 0.0
        %700 = vmatpush1.xpose.msra.mxu0 0.0
        %701 = vmatprep.subr.mxu0 0.0
        %702 = vmatpush1.xpose.msra.mxu0 0.0
        %703 = vmatprep.subr.mxu0 0.0
        %704 = vmatpush1.xpose.msra.mxu0 0.0
        %705 = vmatprep.subr.mxu0 0.0
        %706 = vmatpush1.xpose.msra.mxu0 0.0
        %707 = vmatprep.subr.mxu0 0.0
        %708 = vmatpush1.xpose.msra.mxu0 0.0
        %709 = vmatprep.subr.mxu0 0.0
        %710 = vmatpush1.xpose.msra.mxu0 0.0
        %711 = vmatprep.subr.mxu0 0.0
        %712 = vmatpush1.xpose.msra.mxu0 0.0
        %713 = vmatprep.subr.mxu0 0.0
        %714 = vmatpush1.xpose.msra.mxu0 0.0
        %715 = vmatprep.subr.mxu0 0.0
        %716 = vmatpush1.xpose.msra.mxu0 0.0
        %717 = vmatprep.subr.mxu0 0.0
        %718 = vmatpush1.xpose.msra.mxu0 0.0
        %719 = vmatprep.subr.mxu0 0.0
        %720 = vmatpush1.xpose.msra.mxu0 0.0
        %721 = vmatprep.subr.mxu0 0.0
        %722 = vmatpush1.xpose.msra.mxu0 %v691
        %723 = vmatprep.subr.mxu0 0.0
        %724 = vmatpush1.xpose.msra.mxu0 %v689
        %725 = vmatprep.subr.mxu0 0.0
        %726 = vmatpush2.xpose.msra.mxu0 0.0
        %727 = vmatprep.subr.mxu0 0.0
        %728 = vmatpush2.xpose.msra.mxu0 0.0
        %729 = vmatprep.subr.mxu0 0.0
        %730 = vmatpush2.xpose.msra.mxu0 0.0
        %731 = vmatprep.subr.mxu0 0.0
        %732 = vmatpush2.xpose.msra.mxu0 0.0
        %733 = vmatprep.subr.mxu0 0.0
        %734 = vmatpush2.xpose.msra.mxu0 0.0
        %735 = vmatprep.subr.mxu0 0.0
        %736 = vmatpush2.xpose.msra.mxu0 0.0
        %737 = vmatprep.subr.mxu0 0.0
        %738 = vmatpush2.xpose.msra.mxu0 0.0
        %739 = vmatprep.subr.mxu0 0.0
        %740 = vmatpush2.xpose.msra.mxu0 0.0
        %741 = vmatprep.subr.mxu0 0.0
        %742 = vmatpush2.xpose.msra.mxu0 0.0
        %743 = vmatprep.subr.mxu0 0.0
        %744 = vmatpush2.xpose.msra.mxu0 0.0
        %745 = vmatprep.subr.mxu0 0.0
        %746 = vmatpush2.xpose.msra.mxu0 0.0
        %747 = vmatprep.subr.mxu0 0.0
        %748 = vmatpush2.xpose.msra.mxu0 0.0
        %749 = vmatprep.subr.mxu0 0.0
        %750 = vmatpush2.xpose.msra.mxu0 0.0
        %751 = vmatprep.subr.mxu0 0.0
        %752 = vmatpush2.xpose.msra.mxu0 0.0
        %753 = vmatprep.subr.mxu0 0.0
        %754 = vmatpush2.xpose.msra.mxu0 0.0
        %755 = vmatprep.subr.mxu0 0.0
        %756 = vmatpush2.xpose.msra.mxu0 0.0
        %757 = vmatprep.mubr.f32.mxu0 0.0
        %758 = vmatmul.mubr.f32.gmra.mxu0 %v687
        %v759 = vpop.f32.mrf.mxu0
        %v760 = vadd.f32 0.0, %v759
        %v761 = vpop.f32.mrf.mxu0
        %762 = vdwg.mxu0
        %v763 = vmul.f32 %v760, %v515
        %v764 = vand.u32 2147483647, %v763
        %v765 = vsel %vm516, %v764, -inf
        %766 = vmax.xlane.f32.xlu0 %v765
        %v767 = vpop.xlane.xlu0 %766
        %v768 = vsub.f32 %v764, %v767
        %v769 = vmul.f32 %v768, 1.442695
        %v770 = vpow.pop %v769
        %v771 = vsel %vm516, %v770, 0.0
        %772 = vadd.xlane.f32.xlu0 %v771
        %v773 = vpop.xlane.xlu0 %772
        %776 = vrot.lane.b32.xlu0 %v513, 112
        %v777 = vpop.permute.xlu0 %776
        %778 = vrot.lane.b32.xlu0 %v514, 112
        %v779 = vpop.permute.xlu0 %778
        %v783 = vsel %vm516, %v770, 0
        %785 = vmatprep.subr.mxu0 0.0
        %786 = vmatpush1.msra.mxu0 0.0
        %787 = vmatprep.subr.mxu0 0.0
        %788 = vmatpush1.msra.mxu0 0.0
        %789 = vmatprep.subr.mxu0 0.0
        %790 = vmatpush1.msra.mxu0 0.0
        %791 = vmatprep.subr.mxu0 0.0
        %792 = vmatpush1.msra.mxu0 0.0
        %793 = vmatprep.subr.mxu0 0.0
        %794 = vmatpush1.msra.mxu0 0.0
        %795 = vmatprep.subr.mxu0 0.0
        %796 = vmatpush1.msra.mxu0 0.0
        %797 = vmatprep.subr.mxu0 0.0
        %798 = vmatpush1.msra.mxu0 0.0
        %799 = vmatprep.subr.mxu0 0.0
        %800 = vmatpush1.msra.mxu0 0.0
        %801 = vmatprep.subr.mxu0 0.0
        %802 = vmatpush1.msra.mxu0 0.0
        %803 = vmatprep.subr.mxu0 0.0
        %804 = vmatpush1.msra.mxu0 0.0
        %805 = vmatprep.subr.mxu0 0.0
        %806 = vmatpush1.msra.mxu0 0.0
        %807 = vmatprep.subr.mxu0 0.0
        %808 = vmatpush1.msra.mxu0 0.0
        %809 = vmatprep.subr.mxu0 0.0
        %810 = vmatpush1.msra.mxu0 0.0
        %811 = vmatprep.subr.mxu0 0.0
        %812 = vmatpush1.msra.mxu0 0.0
        %813 = vmatprep.subr.mxu0 0.0
        %814 = vmatpush1.msra.mxu0 %v779
        %815 = vmatprep.subr.mxu0 0.0
        %816 = vmatpush1.msra.mxu0 %v777
        %817 = vmatprep.subr.mxu0 0.0
        %818 = vmatpush2.msra.mxu0 0.0
        %819 = vmatprep.subr.mxu0 0.0
        %820 = vmatpush2.msra.mxu0 0.0
        %821 = vmatprep.subr.mxu0 0.0
        %822 = vmatpush2.msra.mxu0 0.0
        %823 = vmatprep.subr.mxu0 0.0
        %824 = vmatpush2.msra.mxu0 0.0
        %825 = vmatprep.subr.mxu0 0.0
        %826 = vmatpush2.msra.mxu0 0.0
        %827 = vmatprep.subr.mxu0 0.0
        %828 = vmatpush2.msra.mxu0 0.0
        %829 = vmatprep.subr.mxu0 0.0
        %830 = vmatpush2.msra.mxu0 0.0
        %831 = vmatprep.subr.mxu0 0.0
        %832 = vmatpush2.msra.mxu0 0.0
        %833 = vmatprep.subr.mxu0 0.0
        %834 = vmatpush2.msra.mxu0 0.0
        %835 = vmatprep.subr.mxu0 0.0
        %836 = vmatpush2.msra.mxu0 0.0
        %837 = vmatprep.subr.mxu0 0.0
        %838 = vmatpush2.msra.mxu0 0.0
        %839 = vmatprep.subr.mxu0 0.0
        %840 = vmatpush2.msra.mxu0 0.0
        %841 = vmatprep.subr.mxu0 0.0
        %842 = vmatpush2.msra.mxu0 0.0
        %843 = vmatprep.subr.mxu0 0.0
        %844 = vmatpush2.msra.mxu0 0.0
        %845 = vmatprep.subr.mxu0 0.0
        %846 = vmatpush2.msra.mxu0 0.0
        %847 = vmatprep.subr.mxu0 0.0
        %848 = vmatpush2.msra.mxu0 0.0
        %849 = vmatprep.mubr.f32.mxu0 0.0
        %850 = vmatmul.mubr.f32.gmra.mxu0 %v783
        %v851 = vpop.f32.mrf.mxu0
        %v852 = vadd.f32 0.0, %v851
        %v853 = vpop.f32.mrf.mxu0
        %854 = vdwg.mxu0
        %v855 = vrcp.pop %v773
        %v856 = vmul.f32 %v852, %v855
        %858 = vrot.lane.b32.xlu0 %v856, 16
        %v859 = vpop.permute.xlu0 %858
        %v861 = vsel %vm516, %v680, %v859
        %862 = vst.msk [vmem:[%s347] sm:$0xff] %vm424, %v861
        %s863 = sand.u32 %s176, 1
        %s864 = scalar_lea.sflag [#allocation4], %s863
        %s865 = sand.u32 %s176, 1
        %s866 = smul.addr %s865, 8
        %s867 = scalar_lea.vmem [#allocation5], %s866
        %s868 = sand.u32 %s27, 1
        %s869 = scalar_lea.sflag [#allocation7], %s868
        %s870 = sand.u32 %s202, 1
        %s871 = smul.addr %s870, 16
        %s872 = scalar_lea.vmem [#allocation6], %s871
        %s873 = sand.u32 %s27, 1
        %s874 = scalar_lea.sflag [#allocation7], %s873
        %s875 = sand.u32 %s228, 1
        %s876 = smul.addr %s875, 16
        %s877 = scalar_lea.vmem [#allocation8], %s876
        // Predicated region
        $region49: #{tpu_custom_call.1} parent=43 // pred_check
          %p878 = pneg %p186
        $region50: #{tpu_custom_call.1} parent=43 // pred_check_branch
          %880 = sbr.rel (%p878) target = $region52
        $region51: #{tpu_custom_call.1} parent=43 // pred_region
          %s882 = ssub.s32 128, 128
          %883 = vsyncadd %s864, %s882
          %s884 = smul.addr %s27, 128
          %s885 = scalar_lea.hbm %s6, %s884
          %s887 = sshll.u32 %s867, 4
          %s888 = int_to_ptr.vmem [resolvable:$true] %s887
          %890 = dma.vmem_to_hbm [thread:$0]  %s888, 128, %s885, %s864
        $region52: #{tpu_custom_call.1} parent=43 // pred_fallthru
          _
        // Predicated region
        $region53: #{tpu_custom_call.1} parent=43 // pred_check
          %p891 = pneg %p212
        $region54: #{tpu_custom_call.1} parent=43 // pred_check_branch
          %893 = sbr.rel (%p891) target = $region56
        $region55: #{tpu_custom_call.1} parent=43 // pred_region
          %s895 = ssub.s32 256, 256
          %896 = vsyncadd %s869, %s895
          %s897 = smul.addr %s27, 2
          %s898 = smul.addr %s897, 128
          %s899 = scalar_lea.hbm %s7, %s898
          %s900 = sshll.u32 %s872, 4
          %s901 = int_to_ptr.vmem [resolvable:$true] %s900
          %906 = dma.vmem_to_hbm [thread:$0]  %s901, 256, %s899, %s869, 128, 128, 8
        $region56: #{tpu_custom_call.1} parent=43 // pred_fallthru
          _
        // Predicated region
        $region57: #{tpu_custom_call.1} parent=43 // pred_check
          %p907 = pneg %p238
        $region58: #{tpu_custom_call.1} parent=43 // pred_check_branch
          %909 = sbr.rel (%p907) target = $region60
        $region59: #{tpu_custom_call.1} parent=43 // pred_region
          %s911 = ssub.s32 256, 256
          %912 = vsyncadd %s874, %s911
          %s913 = smul.addr %s27, 2
          %s914 = smul.addr %s913, 128
          %s915 = scalar_lea.hbm %s8, %s914
          %s916 = sshll.u32 %s877, 4
          %s917 = int_to_ptr.vmem [resolvable:$true] %s916
          %922 = dma.vmem_to_hbm [thread:$0]  %s917, 256, %s915, %s874, 128, 128, 8
        $region60: #{tpu_custom_call.1} parent=43 // pred_fallthru
          _
      $region44: #{tpu_custom_call.1} parent=5 // pred_fallthru
        _
      %p923 = scmp.le.s32.totalorder 2, %s22
      // Predicated region
      $region61: #{tpu_custom_call.1} parent=5 // pred_check
        %p924 = pneg %p923
      $region62: #{tpu_custom_call.1} parent=5 // pred_check_branch
        %926 = sbr.rel (%p924) target = $region64
      $region63: #{tpu_custom_call.1} parent=5 // pred_region
        %s927 = ssub.s32 %s22, 2
        // Predicated region
        $region65: #{tpu_custom_call.1} parent=63 // pred_check
          %p928 = pneg %p192
        $region66: #{tpu_custom_call.1} parent=63 // pred_check_branch
          %930 = sbr.rel (%p928) target = $region68
        $region67: #{tpu_custom_call.1} parent=63 // pred_region
          %s931 = sand.u32 %s177, 1
          %s932 = scalar_lea.sflag [#allocation4], %s931
          %s933 = sand.u32 %s177, 1
          %s934 = smul.addr %s933, 8
          %s935 = scalar_lea.vmem [#allocation5], %s934
          %936 = dma.done %s932, 128
        $region68: #{tpu_custom_call.1} parent=63 // pred_fallthru
          _
        // Predicated region
        $region69: #{tpu_custom_call.1} parent=63 // pred_check
          %p937 = pneg %p218
        $region70: #{tpu_custom_call.1} parent=63 // pred_check_branch
          %939 = sbr.rel (%p937) target = $region72
        $region71: #{tpu_custom_call.1} parent=63 // pred_region
          %s940 = sand.u32 %s28, 1
          %s941 = scalar_lea.sflag [#allocation7], %s940
          %s942 = sand.u32 %s203, 1
          %s943 = smul.addr %s942, 16
          %s944 = scalar_lea.vmem [#allocation6], %s943
          %945 = dma.done %s941, 256
        $region72: #{tpu_custom_call.1} parent=63 // pred_fallthru
          _
        // Predicated region
        $region73: #{tpu_custom_call.1} parent=63 // pred_check
          %p946 = pneg %p244
        $region74: #{tpu_custom_call.1} parent=63 // pred_check_branch
          %948 = sbr.rel (%p946) target = $region76
        $region75: #{tpu_custom_call.1} parent=63 // pred_region
          %s949 = sand.u32 %s28, 1
          %s950 = scalar_lea.sflag [#allocation7], %s949
          %s951 = sand.u32 %s229, 1
          %s952 = smul.addr %s951, 16
          %s953 = scalar_lea.vmem [#allocation8], %s952
          %954 = dma.done %s950, 256
        $region76: #{tpu_custom_call.1} parent=63 // pred_fallthru
          _
      $region64: #{tpu_custom_call.1} parent=5 // pred_fallthru
        _
    $region6: #{tpu_custom_call.1} parent=1 // loop_footer
      %s26 = sadd.s32 1, %s22
    $region7: #{tpu_custom_call.1} parent=1 // loop_footer_branch
      %21 = sbr.rel target = $region3
    $region8: #{tpu_custom_call.1} parent=1 // loop_exit
      _
    %955 = vsyncpa [#allocation3], 1
    %s956 = scalar_lea.sflag [#allocation3], 1
    %957 = vsyncpa %s956, 1
    %958 = vsyncpa [#allocation4], 1
    %s959 = scalar_lea.sflag [#allocation4], 1
    %960 = vsyncpa %s959, 1
    %961 = vsyncpa [#allocation7], 1
    %s962 = scalar_lea.sflag [#allocation7], 1
    %963 = vsyncpa %s962, 1

</llo_original>
